<compile_context>
chip_gen: v5e
topology: v5e:2x2
jax: 0.10.0
libtpu: 0.0.40
codegen_flags: <defaults>
</compile_context>

<pallas_src>
import jax
import jax.numpy as jnp
from jax.experimental import pallas as pl
from jax.experimental.pallas import tpu as pltpu

_OUT_LANES = 128          # lane-dense scalar output: [loss, base_loss, distance_loss, 0, ...]
_VMEM_TILE_BUDGET = 12 * 1024 * 1024   # bytes for the double-buffered logits tiles


def _sum2d(v):
    """Full reduction of a 2-D tile to a (1, 1) array (lane reduce, then sublane)."""
    return jnp.sum(jnp.sum(v, axis=-1, keepdims=True), axis=-2, keepdims=True)


def _pick_row_tile(b, itemsize):
    """Largest row tile (multiple of 8) that divides B and keeps the double-buffered
    img+txt tiles within the VMEM budget; falls back to a full-B block."""
    for tm in (1024, 512, 256, 128, 64, 32, 16, 8):
        if b % tm == 0 and 4 * tm * b * itemsize <= _VMEM_TILE_BUDGET:
            return tm
    return b  # full-dim block is always a legal block shape


def _build_fused_call(B, in_dtype, Nx, group_lens, group_weights, Gmax,
                      fairness_weight, compute_distance):
    """Build the fused pallas_call for a given static configuration."""
    n_groups = len(group_lens)
    TM = _pick_row_tile(B, jnp.dtype(in_dtype).itemsize)
    num_blocks = B // TM
    inv_2b = 1.0 / (2.0 * B)
    total_w = float(sum(group_weights)) if compute_distance else 0.0

    def kernel(*refs):
        if compute_distance:
            (gt_ref, img_ref, txt_ref, xcol_ref, xrow_ref,
             yrow_ref, ycol_ref, out_ref, acc_ref, dist_ref) = refs
        else:
            gt_ref, img_ref, txt_ref, out_ref, acc_ref = refs
            dist_ref = None

        i = pl.program_id(0)

        @pl.when(i == 0)
        def _init():
            acc_ref[...] = jnp.zeros_like(acc_ref)

        # ---- fairness term: computed once at step 0, parked in scratch (hides under DMA) ----
        if compute_distance:
            @pl.when(i == 0)
            def _distance():
                x_col = xcol_ref[...].astype(jnp.float32)             # (Nx, 1)
                x_row = xrow_ref[...].astype(jnp.float32)             # (1, Nx)
                y_rows = yrow_ref[...].astype(jnp.float32)            # (n_groups, Gmax)
                y_cols = ycol_ref[...].astype(jnp.float32)            # (Gmax, n_groups)

                # Hoisted: the x-x self distance is identical for every group/attribute.
                xx = _sum2d(jnp.abs(x_col - x_row)) * (1.0 / (Nx * Nx))
                dist = xx * jnp.float32(-0.5 * total_w)

                for g in range(n_groups):                             # static unroll
                    L = group_lens[g]
                    w = group_weights[g]
                    yg_row = y_rows[g:g + 1, :]                       # (1, Gmax)
                    yg_col = y_cols[:, g:g + 1]                       # (Gmax, 1)

                    dxy = jnp.abs(x_col - yg_row)                     # (Nx, Gmax)
                    dyy = jnp.abs(yg_col - yg_row)                    # (Gmax, Gmax)
                    if L != Gmax:  # mask padded points; divide by true counts
                        lane_ok = jax.lax.broadcasted_iota(jnp.int32, (1, Gmax), 1) < L
                        sub_ok = jax.lax.broadcasted_iota(jnp.int32, (Gmax, 1), 0) < L
                        dxy = jnp.where(lane_ok, dxy, 0.0)
                        dyy = jnp.where(lane_ok, jnp.where(sub_ok, dyy, 0.0), 0.0)
                    xy = _sum2d(dxy) * (1.0 / (Nx * L))
                    yy = _sum2d(dyy) * (1.0 / (L * L))
                    dist = dist + jnp.float32(w) * (xy - 0.5 * yy)

                dist_ref[...] = dist

        # ---- base loss partial: streamed row tile; one-hot built in-kernel from labels ----
        labels = gt_ref[...]                                          # (TM, 1) int32
        col_ids = jax.lax.broadcasted_iota(jnp.int32, (TM, B), 1)
        onehot = col_ids == labels                                    # (TM, B) bool

        def ce_rowsum(logits_raw):
            logits = logits_raw.astype(jnp.float32)                   # bf16-friendly upcast
            m = jnp.max(logits, axis=-1, keepdims=True)
            lse = m + jnp.log(jnp.sum(jnp.exp(logits - m), axis=-1, keepdims=True))
            tgt = jnp.sum(jnp.where(onehot, logits, 0.0), axis=-1, keepdims=True)
            return jnp.sum(lse - tgt, axis=-2, keepdims=True)         # (1, 1)

        acc_ref[...] += ce_rowsum(img_ref[...]) + ce_rowsum(txt_ref[...])

        # ---- finalize: combine base loss and (already computed) fairness distance ----
        @pl.when(i == num_blocks - 1)
        def _finalize():
            base = acc_ref[...] * inv_2b                              # (1, 1)
            if compute_distance:
                dist = dist_ref[...]
            else:
                dist = jnp.zeros((1, 1), jnp.float32)

            loss = base + jnp.float32(fairness_weight) * dist

            lane = jax.lax.broadcasted_iota(jnp.int32, (1, _OUT_LANES), 1)
            out_ref[...] = (jnp.where(lane == 0, loss, 0.0)
                            + jnp.where(lane == 1, base, 0.0)
                            + jnp.where(lane == 2, dist, 0.0))

    in_specs = [
        pl.BlockSpec((TM, 1), lambda i: (i, 0)),          # ground-truth labels (int32 column)
        pl.BlockSpec((TM, B), lambda i: (i, 0)),          # logits_per_image row tile
        pl.BlockSpec((TM, B), lambda i: (i, 0)),          # logits_per_text row tile
    ]
    scratch_shapes = [pltpu.VMEM((1, 1), jnp.float32)]    # base-loss accumulator
    if compute_distance:
        in_specs += [
            pl.BlockSpec((Nx, 1), lambda i: (0, 0)),           # correlations (column view)
            pl.BlockSpec((1, Nx), lambda i: (0, 0)),           # correlations (row view)
            pl.BlockSpec((n_groups, Gmax), lambda i: (0, 0)),  # stacked group clouds (rows)
            pl.BlockSpec((Gmax, n_groups), lambda i: (0, 0)),  # stacked group clouds (cols)
        ]
        scratch_shapes += [pltpu.VMEM((1, 1), jnp.float32)]    # fairness-distance scratch

    return pl.pallas_call(
        kernel,
        out_shape=jax.ShapeDtypeStruct((1, _OUT_LANES), jnp.float32),
        grid=(num_blocks,),
        in_specs=in_specs,
        out_specs=pl.BlockSpec((1, _OUT_LANES), lambda i: (0, 0)),
        scratch_shapes=scratch_shapes,
        compiler_params=pltpu.CompilerParams(
            dimension_semantics=("arbitrary",)),  # row axis is a reduction into the scratch
    )


class FairCLIPPlusLoss:
    """JAX/Pallas port of FairCLIPlus.HPO_FairCLIPPlus.FairCLIPPlusLoss.

    loss_img / loss_txt -> mean-reduction cross entropy (fused in-kernel)
    distance_loss       -> energy distance between 1-D point clouds (fused in-kernel)
    """

    def __init__(self, fairness_weight, attributes):
        self.fairness_weight = float(fairness_weight)
        self.attributes = attributes

    def __call__(self, logits_per_image, logits_per_text, features_per_attribute,
                 correlations_with_batch, ground_truth):
        B = logits_per_image.shape[0]

        # Collect active groups (group sizes and attribute weights are static).
        active = []  # (1-D vector, static length, attribute weight)
        if self.fairness_weight != 0:
            for attr_name, attr_weight in self.attributes.items():
                if attr_weight == 0:
                    continue
                for _, sims in features_per_attribute[attr_name].items():
                    v = jnp.ravel(sims).astype(jnp.float32)
                    active.append((v, int(v.shape[0]), float(attr_weight)))
        compute_distance = self.fairness_weight != 0 and len(active) > 0

        gt_col = ground_truth.astype(jnp.int32).reshape(B, 1)
        args = [gt_col, logits_per_image, logits_per_text]

        if compute_distance:
            x = jnp.ravel(correlations_with_batch).astype(jnp.float32)
            Nx = int(x.shape[0])
            group_lens = tuple(L for _, L, _ in active)
            group_weights = tuple(w for _, _, w in active)
            Gmax = max(group_lens)
            y_rows = jnp.stack([jnp.pad(v, (0, Gmax - L)) for v, L, _ in active], axis=0)
            args += [x.reshape(Nx, 1), x.reshape(1, Nx), y_rows, y_rows.T]
        else:
            Nx, group_lens, group_weights, Gmax = 0, (), (), 0

        fused = _build_fused_call(
            B=B, in_dtype=logits_per_image.dtype, Nx=Nx, group_lens=group_lens,
            group_weights=group_weights, Gmax=Gmax,
            fairness_weight=self.fairness_weight, compute_distance=compute_distance)
        out = fused(*args)  # (1, 128): [loss, base_loss, distance_loss, 0, ...]

        base_loss = out[0, 1]
        if self.fairness_weight == 0:
            return base_loss
        # NOTE: JAX scalars (no blocking float() host sync); convert only when logging.
        return out[0, 0], base_loss, out[0, 2]


if __name__ == "__main__":
    key = jax.random.PRNGKey(0)
    B = 8  # batch size (CLIP logits are [B, B])

    keys = jax.random.split(key, 8)
    logits_per_image = 3.0 * jax.random.normal(keys[0], (B, B), jnp.float32)
    logits_per_text = logits_per_image.T
    ground_truth = jnp.arange(B, dtype=jnp.int32)
    correlations_with_batch = jax.random.normal(keys[1], (B,), jnp.float32)

    # features_per_attribute[attr][group] = 1-D scaled-similarity vector per group
    features_per_attribute = {
        "race": {
            "asian": jax.random.normal(keys[2], (8,), jnp.float32),
            "black": jax.random.normal(keys[3], (8,), jnp.float32),
            "white": jax.random.normal(keys[4], (8,), jnp.float32),
        },
        "gender": {
            "female": jax.random.normal(keys[5], (8,), jnp.float32),
            "male": jax.random.normal(keys[6], (8,), jnp.float32),
        },
        "ethnicity": {  # weight 0 -> skipped by the forward pass
            "group0": jax.random.normal(keys[7], (8,), jnp.float32),
        },
    }
    attributes = {"race": 1.0, "gender": 0.5, "ethnicity": 0.0}

    loss_fn = FairCLIPPlusLoss(fairness_weight=0.5, attributes=attributes)
    loss, base_loss, distance_loss = loss_fn(
        logits_per_image, logits_per_text, features_per_attribute,
        correlations_with_batch, ground_truth)
    jax.block_until_ready(loss)

    # fairness_weight == 0 early-return branch (returns only the base loss).
    base_only = FairCLIPPlusLoss(fairness_weight=0, attributes=attributes)(
        logits_per_image, logits_per_text, features_per_attribute,
        correlations_with_batch, ground_truth)
    jax.block_until_ready(base_only)

    # ---- pure-JAX reference check ----
    def _ce(logits, labels):
        logp = jax.nn.log_softmax(logits.astype(jnp.float32), axis=-1)
        return -jnp.mean(jnp.take_along_axis(logp, labels[:, None], axis=-1))

    ref_base = 0.5 * (_ce(logits_per_image, ground_truth)
                      + _ce(logits_per_text, ground_truth))
    x = correlations_with_batch
    ref_dist = jnp.float32(0.0)
    for attr_name, w in attributes.items():
        if w == 0:
            continue
        attr_loss = jnp.float32(0.0)
        for _, y in features_per_attribute[attr_name].items():
            xy = jnp.mean(jnp.abs(x[:, None] - y[None, :]))
            xx = jnp.mean(jnp.abs(x[:, None] - x[None, :]))
            yy = jnp.mean(jnp.abs(y[:, None] - y[None, :]))
            attr_loss = attr_loss + (xy - 0.5 * xx - 0.5 * yy)
        ref_dist = ref_dist + w * attr_loss
    ref_loss = ref_base + 0.5 * ref_dist

    assert jnp.allclose(base_loss, ref_base, atol=1e-4), (base_loss, ref_base)
    assert jnp.allclose(distance_loss, ref_dist, atol=1e-4), (distance_loss, ref_dist)
    assert jnp.allclose(loss, ref_loss, atol=1e-4), (loss, ref_loss)
    assert jnp.allclose(base_only, ref_base, atol=1e-4), (base_only, ref_base)

    print("KERNEL_OK")
</pallas_src>

<mosaic_0001>
module attributes {stable_mosaic.version = 11 : i64} {
  func.func @kernel(%arg0: i32, %arg1: memref<8x1xi32, #tpu.memory_space<vmem>>, %arg2: memref<8x8xf32, #tpu.memory_space<vmem>>, %arg3: memref<8x8xf32, #tpu.memory_space<vmem>>, %arg4: memref<8x1xf32, #tpu.memory_space<vmem>>, %arg5: memref<1x8xf32, #tpu.memory_space<vmem>>, %arg6: memref<5x8xf32, #tpu.memory_space<vmem>>, %arg7: memref<8x5xf32, #tpu.memory_space<vmem>>, %arg8: memref<1x128xf32, #tpu.memory_space<vmem>>, %arg9: memref<1x1xf32, #tpu.memory_space<vmem>>, %arg10: memref<1x1xf32, #tpu.memory_space<vmem>>) attributes {dimension_semantics = [#tpu.dimension_semantics<arbitrary>], iteration_bounds = array<i64: 1>, scalar_prefetch = 0 : i64, scratch_operands = 2 : i64, tpu.core_type = #tpu.core_type<tc>, window_params = [{transform_indices = @transform_0, window_bounds = array<i64: 8, 1>}, {transform_indices = @transform_1, window_bounds = array<i64: 8, 8>}, {transform_indices = @transform_2, window_bounds = array<i64: 8, 8>}, {pipeline_mode = #tpu.pipeline_mode<synchronous>, transform_indices = @transform_3, window_bounds = array<i64: 8, 1>}, {pipeline_mode = #tpu.pipeline_mode<synchronous>, transform_indices = @transform_4, window_bounds = array<i64: 1, 8>}, {pipeline_mode = #tpu.pipeline_mode<synchronous>, transform_indices = @transform_5, window_bounds = array<i64: 5, 8>}, {pipeline_mode = #tpu.pipeline_mode<synchronous>, transform_indices = @transform_6, window_bounds = array<i64: 8, 5>}, {pipeline_mode = #tpu.pipeline_mode<synchronous>, transform_indices = @transform_7, window_bounds = array<i64: 1, 128>}]} {
    %c0_i32 = arith.constant 0 : i32
    %0 = arith.cmpi eq, %arg0, %c0_i32 : i32
    %1 = arith.extui %0 : i1 to i32
    %c0_i32_0 = arith.constant 0 : i32
    %2 = arith.cmpi ne, %1, %c0_i32_0 : i32
    scf.if %2 {
      %cst_23 = arith.constant 0.000000e+00 : f32
      %51 = vector.broadcast %cst_23 : f32 to vector<1x1xf32>
      %c0_24 = arith.constant 0 : index
      %c0_25 = arith.constant 0 : index
      %52 = vector.load %arg9[%c0_24, %c0_25] : memref<1x1xf32, #tpu.memory_space<vmem>>, vector<1x1xf32>
      tpu.vector_store %arg9[%c0_24, %c0_25], %51 {strides = array<i32>} : memref<1x1xf32, #tpu.memory_space<vmem>>, vector<1x1xf32>,
    } else {
    }
    %c0_i32_1 = arith.constant 0 : i32
    %3 = arith.cmpi eq, %arg0, %c0_i32_1 : i32
    %4 = arith.extui %3 : i1 to i32
    %c0_i32_2 = arith.constant 0 : i32
    %5 = arith.cmpi ne, %4, %c0_i32_2 : i32
    scf.if %5 {
      %c0_23 = arith.constant 0 : index
      %c0_24 = arith.constant 0 : index
      %51 = vector.load %arg4[%c0_23, %c0_24] : memref<8x1xf32, #tpu.memory_space<vmem>>, vector<8x1xf32>
      %c0_25 = arith.constant 0 : index
      %c0_26 = arith.constant 0 : index
      %52 = vector.load %arg5[%c0_25, %c0_26] : memref<1x8xf32, #tpu.memory_space<vmem>>, vector<1x8xf32>
      %c0_27 = arith.constant 0 : index
      %c0_28 = arith.constant 0 : index
      %53 = vector.load %arg6[%c0_27, %c0_28] : memref<5x8xf32, #tpu.memory_space<vmem>>, vector<5x8xf32>
      %c0_29 = arith.constant 0 : index
      %c0_30 = arith.constant 0 : index
      %54 = vector.load %arg7[%c0_29, %c0_30] : memref<8x5xf32, #tpu.memory_space<vmem>>, vector<8x5xf32>
      %55 = vector.broadcast %51 : vector<8x1xf32> to vector<8x8xf32>
      %56 = vector.broadcast %52 : vector<1x8xf32> to vector<8x8xf32>
      %57 = arith.subf %55, %56 : vector<8x8xf32>
      %58 = math.absf %57 : vector<8x8xf32>
      %cst_31 = arith.constant dense<0.000000e+00> : vector<8xf32>
      %59 = vector.multi_reduction <add>, %58, %cst_31 [1] : vector<8x8xf32> to vector<8xf32>
      %60 = vector.shape_cast %59 : vector<8xf32> to vector<8x1xf32>
      %cst_32 = arith.constant dense<0.000000e+00> : vector<1xf32>
      %61 = vector.multi_reduction <add>, %60, %cst_32 [0] : vector<8x1xf32> to vector<1xf32>
      %62 = vector.shape_cast %61 : vector<1xf32> to vector<1x1xf32>
      %cst_33 = arith.constant 1.562500e-02 : f32
      %63 = vector.broadcast %cst_33 : f32 to vector<1x1xf32>
      %64 = arith.mulf %62, %63 : vector<1x1xf32>
      %cst_34 = arith.constant -2.000000e+00 : f32
      %65 = vector.broadcast %cst_34 : f32 to vector<1x1xf32>
      %66 = arith.mulf %64, %65 : vector<1x1xf32>
      %67 = vector.extract_strided_slice %53 {offsets = [0, 0], sizes = [1, 8], strides = [1, 1]} : vector<5x8xf32> to vector<1x8xf32>
      %68 = vector.extract_strided_slice %54 {offsets = [0, 0], sizes = [8, 1], strides = [1, 1]} : vector<8x5xf32> to vector<8x1xf32>
      %69 = vector.broadcast %51 : vector<8x1xf32> to vector<8x8xf32>
      %70 = vector.broadcast %67 : vector<1x8xf32> to vector<8x8xf32>
      %71 = arith.subf %69, %70 : vector<8x8xf32>
      %72 = math.absf %71 : vector<8x8xf32>
      %73 = vector.broadcast %68 : vector<8x1xf32> to vector<8x8xf32>
      %74 = vector.broadcast %67 : vector<1x8xf32> to vector<8x8xf32>
      %75 = arith.subf %73, %74 : vector<8x8xf32>
      %76 = math.absf %75 : vector<8x8xf32>
      %cst_35 = arith.constant dense<0.000000e+00> : vector<8xf32>
      %77 = vector.multi_reduction <add>, %72, %cst_35 [1] : vector<8x8xf32> to vector<8xf32>
      %78 = vector.shape_cast %77 : vector<8xf32> to vector<8x1xf32>
      %cst_36 = arith.constant dense<0.000000e+00> : vector<1xf32>
      %79 = vector.multi_reduction <add>, %78, %cst_36 [0] : vector<8x1xf32> to vector<1xf32>
      %80 = vector.shape_cast %79 : vector<1xf32> to vector<1x1xf32>
      %cst_37 = arith.constant 1.562500e-02 : f32
      %81 = vector.broadcast %cst_37 : f32 to vector<1x1xf32>
      %82 = arith.mulf %80, %81 : vector<1x1xf32>
      %cst_38 = arith.constant dense<0.000000e+00> : vector<8xf32>
      %83 = vector.multi_reduction <add>, %76, %cst_38 [1] : vector<8x8xf32> to vector<8xf32>
      %84 = vector.shape_cast %83 : vector<8xf32> to vector<8x1xf32>
      %cst_39 = arith.constant dense<0.000000e+00> : vector<1xf32>
      %85 = vector.multi_reduction <add>, %84, %cst_39 [0] : vector<8x1xf32> to vector<1xf32>
      %86 = vector.shape_cast %85 : vector<1xf32> to vector<1x1xf32>
      %cst_40 = arith.constant 1.562500e-02 : f32
      %87 = vector.broadcast %cst_40 : f32 to vector<1x1xf32>
      %88 = arith.mulf %86, %87 : vector<1x1xf32>
      %cst_41 = arith.constant 5.000000e-01 : f32
      %89 = vector.broadcast %cst_41 : f32 to vector<1x1xf32>
      %90 = arith.mulf %89, %88 : vector<1x1xf32>
      %91 = arith.subf %82, %90 : vector<1x1xf32>
      %cst_42 = arith.constant 1.000000e+00 : f32
      %92 = vector.broadcast %cst_42 : f32 to vector<1x1xf32>
      %93 = arith.mulf %92, %91 : vector<1x1xf32>
      %94 = arith.addf %66, %93 : vector<1x1xf32>
      %95 = vector.extract_strided_slice %53 {offsets = [1, 0], sizes = [1, 8], strides = [1, 1]} : vector<5x8xf32> to vector<1x8xf32>
      %96 = vector.extract_strided_slice %54 {offsets = [0, 1], sizes = [8, 1], strides = [1, 1]} : vector<8x5xf32> to vector<8x1xf32>
      %97 = vector.broadcast %51 : vector<8x1xf32> to vector<8x8xf32>
      %98 = vector.broadcast %95 : vector<1x8xf32> to vector<8x8xf32>
      %99 = arith.subf %97, %98 : vector<8x8xf32>
      %100 = math.absf %99 : vector<8x8xf32>
      %101 = vector.broadcast %96 : vector<8x1xf32> to vector<8x8xf32>
      %102 = vector.broadcast %95 : vector<1x8xf32> to vector<8x8xf32>
      %103 = arith.subf %101, %102 : vector<8x8xf32>
      %104 = math.absf %103 : vector<8x8xf32>
      %cst_43 = arith.constant dense<0.000000e+00> : vector<8xf32>
      %105 = vector.multi_reduction <add>, %100, %cst_43 [1] : vector<8x8xf32> to vector<8xf32>
      %106 = vector.shape_cast %105 : vector<8xf32> to vector<8x1xf32>
      %cst_44 = arith.constant dense<0.000000e+00> : vector<1xf32>
      %107 = vector.multi_reduction <add>, %106, %cst_44 [0] : vector<8x1xf32> to vector<1xf32>
      %108 = vector.shape_cast %107 : vector<1xf32> to vector<1x1xf32>
      %cst_45 = arith.constant 1.562500e-02 : f32
      %109 = vector.broadcast %cst_45 : f32 to vector<1x1xf32>
      %110 = arith.mulf %108, %109 : vector<1x1xf32>
      %cst_46 = arith.constant dense<0.000000e+00> : vector<8xf32>
      %111 = vector.multi_reduction <add>, %104, %cst_46 [1] : vector<8x8xf32> to vector<8xf32>
      %112 = vector.shape_cast %111 : vector<8xf32> to vector<8x1xf32>
      %cst_47 = arith.constant dense<0.000000e+00> : vector<1xf32>
      %113 = vector.multi_reduction <add>, %112, %cst_47 [0] : vector<8x1xf32> to vector<1xf32>
      %114 = vector.shape_cast %113 : vector<1xf32> to vector<1x1xf32>
      %cst_48 = arith.constant 1.562500e-02 : f32
      %115 = vector.broadcast %cst_48 : f32 to vector<1x1xf32>
      %116 = arith.mulf %114, %115 : vector<1x1xf32>
      %cst_49 = arith.constant 5.000000e-01 : f32
      %117 = vector.broadcast %cst_49 : f32 to vector<1x1xf32>
      %118 = arith.mulf %117, %116 : vector<1x1xf32>
      %119 = arith.subf %110, %118 : vector<1x1xf32>
      %cst_50 = arith.constant 1.000000e+00 : f32
      %120 = vector.broadcast %cst_50 : f32 to vector<1x1xf32>
      %121 = arith.mulf %120, %119 : vector<1x1xf32>
      %122 = arith.addf %94, %121 : vector<1x1xf32>
      %123 = vector.extract_strided_slice %53 {offsets = [2, 0], sizes = [1, 8], strides = [1, 1]} : vector<5x8xf32> to vector<1x8xf32>
      %124 = vector.extract_strided_slice %54 {offsets = [0, 2], sizes = [8, 1], strides = [1, 1]} : vector<8x5xf32> to vector<8x1xf32>
      %125 = vector.broadcast %51 : vector<8x1xf32> to vector<8x8xf32>
      %126 = vector.broadcast %123 : vector<1x8xf32> to vector<8x8xf32>
      %127 = arith.subf %125, %126 : vector<8x8xf32>
      %128 = math.absf %127 : vector<8x8xf32>
      %129 = vector.broadcast %124 : vector<8x1xf32> to vector<8x8xf32>
      %130 = vector.broadcast %123 : vector<1x8xf32> to vector<8x8xf32>
      %131 = arith.subf %129, %130 : vector<8x8xf32>
      %132 = math.absf %131 : vector<8x8xf32>
      %cst_51 = arith.constant dense<0.000000e+00> : vector<8xf32>
      %133 = vector.multi_reduction <add>, %128, %cst_51 [1] : vector<8x8xf32> to vector<8xf32>
      %134 = vector.shape_cast %133 : vector<8xf32> to vector<8x1xf32>
      %cst_52 = arith.constant dense<0.000000e+00> : vector<1xf32>
      %135 = vector.multi_reduction <add>, %134, %cst_52 [0] : vector<8x1xf32> to vector<1xf32>
      %136 = vector.shape_cast %135 : vector<1xf32> to vector<1x1xf32>
      %cst_53 = arith.constant 1.562500e-02 : f32
      %137 = vector.broadcast %cst_53 : f32 to vector<1x1xf32>
      %138 = arith.mulf %136, %137 : vector<1x1xf32>
      %cst_54 = arith.constant dense<0.000000e+00> : vector<8xf32>
      %139 = vector.multi_reduction <add>, %132, %cst_54 [1] : vector<8x8xf32> to vector<8xf32>
      %140 = vector.shape_cast %139 : vector<8xf32> to vector<8x1xf32>
      %cst_55 = arith.constant dense<0.000000e+00> : vector<1xf32>
      %141 = vector.multi_reduction <add>, %140, %cst_55 [0] : vector<8x1xf32> to vector<1xf32>
      %142 = vector.shape_cast %141 : vector<1xf32> to vector<1x1xf32>
      %cst_56 = arith.constant 1.562500e-02 : f32
      %143 = vector.broadcast %cst_56 : f32 to vector<1x1xf32>
      %144 = arith.mulf %142, %143 : vector<1x1xf32>
      %cst_57 = arith.constant 5.000000e-01 : f32
      %145 = vector.broadcast %cst_57 : f32 to vector<1x1xf32>
      %146 = arith.mulf %145, %144 : vector<1x1xf32>
      %147 = arith.subf %138, %146 : vector<1x1xf32>
      %cst_58 = arith.constant 1.000000e+00 : f32
      %148 = vector.broadcast %cst_58 : f32 to vector<1x1xf32>
      %149 = arith.mulf %148, %147 : vector<1x1xf32>
      %150 = arith.addf %122, %149 : vector<1x1xf32>
      %151 = vector.extract_strided_slice %53 {offsets = [3, 0], sizes = [1, 8], strides = [1, 1]} : vector<5x8xf32> to vector<1x8xf32>
      %152 = vector.extract_strided_slice %54 {offsets = [0, 3], sizes = [8, 1], strides = [1, 1]} : vector<8x5xf32> to vector<8x1xf32>
      %153 = vector.broadcast %51 : vector<8x1xf32> to vector<8x8xf32>
      %154 = vector.broadcast %151 : vector<1x8xf32> to vector<8x8xf32>
      %155 = arith.subf %153, %154 : vector<8x8xf32>
      %156 = math.absf %155 : vector<8x8xf32>
      %157 = vector.broadcast %152 : vector<8x1xf32> to vector<8x8xf32>
      %158 = vector.broadcast %151 : vector<1x8xf32> to vector<8x8xf32>
      %159 = arith.subf %157, %158 : vector<8x8xf32>
      %160 = math.absf %159 : vector<8x8xf32>
      %cst_59 = arith.constant dense<0.000000e+00> : vector<8xf32>
      %161 = vector.multi_reduction <add>, %156, %cst_59 [1] : vector<8x8xf32> to vector<8xf32>
      %162 = vector.shape_cast %161 : vector<8xf32> to vector<8x1xf32>
      %cst_60 = arith.constant dense<0.000000e+00> : vector<1xf32>
      %163 = vector.multi_reduction <add>, %162, %cst_60 [0] : vector<8x1xf32> to vector<1xf32>
      %164 = vector.shape_cast %163 : vector<1xf32> to vector<1x1xf32>
      %cst_61 = arith.constant 1.562500e-02 : f32
      %165 = vector.broadcast %cst_61 : f32 to vector<1x1xf32>
      %166 = arith.mulf %164, %165 : vector<1x1xf32>
      %cst_62 = arith.constant dense<0.000000e+00> : vector<8xf32>
      %167 = vector.multi_reduction <add>, %160, %cst_62 [1] : vector<8x8xf32> to vector<8xf32>
      %168 = vector.shape_cast %167 : vector<8xf32> to vector<8x1xf32>
      %cst_63 = arith.constant dense<0.000000e+00> : vector<1xf32>
      %169 = vector.multi_reduction <add>, %168, %cst_63 [0] : vector<8x1xf32> to vector<1xf32>
      %170 = vector.shape_cast %169 : vector<1xf32> to vector<1x1xf32>
      %cst_64 = arith.constant 1.562500e-02 : f32
      %171 = vector.broadcast %cst_64 : f32 to vector<1x1xf32>
      %172 = arith.mulf %170, %171 : vector<1x1xf32>
      %cst_65 = arith.constant 5.000000e-01 : f32
      %173 = vector.broadcast %cst_65 : f32 to vector<1x1xf32>
      %174 = arith.mulf %173, %172 : vector<1x1xf32>
      %175 = arith.subf %166, %174 : vector<1x1xf32>
      %cst_66 = arith.constant 5.000000e-01 : f32
      %176 = vector.broadcast %cst_66 : f32 to vector<1x1xf32>
      %177 = arith.mulf %176, %175 : vector<1x1xf32>
      %178 = arith.addf %150, %177 : vector<1x1xf32>
      %179 = vector.extract_strided_slice %53 {offsets = [4, 0], sizes = [1, 8], strides = [1, 1]} : vector<5x8xf32> to vector<1x8xf32>
      %180 = vector.extract_strided_slice %54 {offsets = [0, 4], sizes = [8, 1], strides = [1, 1]} : vector<8x5xf32> to vector<8x1xf32>
      %181 = vector.broadcast %51 : vector<8x1xf32> to vector<8x8xf32>
      %182 = vector.broadcast %179 : vector<1x8xf32> to vector<8x8xf32>
      %183 = arith.subf %181, %182 : vector<8x8xf32>
      %184 = math.absf %183 : vector<8x8xf32>
      %185 = vector.broadcast %180 : vector<8x1xf32> to vector<8x8xf32>
      %186 = vector.broadcast %179 : vector<1x8xf32> to vector<8x8xf32>
      %187 = arith.subf %185, %186 : vector<8x8xf32>
      %188 = math.absf %187 : vector<8x8xf32>
      %cst_67 = arith.constant dense<0.000000e+00> : vector<8xf32>
      %189 = vector.multi_reduction <add>, %184, %cst_67 [1] : vector<8x8xf32> to vector<8xf32>
      %190 = vector.shape_cast %189 : vector<8xf32> to vector<8x1xf32>
      %cst_68 = arith.constant dense<0.000000e+00> : vector<1xf32>
      %191 = vector.multi_reduction <add>, %190, %cst_68 [0] : vector<8x1xf32> to vector<1xf32>
      %192 = vector.shape_cast %191 : vector<1xf32> to vector<1x1xf32>
      %cst_69 = arith.constant 1.562500e-02 : f32
      %193 = vector.broadcast %cst_69 : f32 to vector<1x1xf32>
      %194 = arith.mulf %192, %193 : vector<1x1xf32>
      %cst_70 = arith.constant dense<0.000000e+00> : vector<8xf32>
      %195 = vector.multi_reduction <add>, %188, %cst_70 [1] : vector<8x8xf32> to vector<8xf32>
      %196 = vector.shape_cast %195 : vector<8xf32> to vector<8x1xf32>
      %cst_71 = arith.constant dense<0.000000e+00> : vector<1xf32>
      %197 = vector.multi_reduction <add>, %196, %cst_71 [0] : vector<8x1xf32> to vector<1xf32>
      %198 = vector.shape_cast %197 : vector<1xf32> to vector<1x1xf32>
      %cst_72 = arith.constant 1.562500e-02 : f32
      %199 = vector.broadcast %cst_72 : f32 to vector<1x1xf32>
      %200 = arith.mulf %198, %199 : vector<1x1xf32>
      %cst_73 = arith.constant 5.000000e-01 : f32
      %201 = vector.broadcast %cst_73 : f32 to vector<1x1xf32>
      %202 = arith.mulf %201, %200 : vector<1x1xf32>
      %203 = arith.subf %194, %202 : vector<1x1xf32>
      %cst_74 = arith.constant 5.000000e-01 : f32
      %204 = vector.broadcast %cst_74 : f32 to vector<1x1xf32>
      %205 = arith.mulf %204, %203 : vector<1x1xf32>
      %206 = arith.addf %178, %205 : vector<1x1xf32>
      %c0_75 = arith.constant 0 : index
      %c0_76 = arith.constant 0 : index
      %207 = vector.load %arg10[%c0_75, %c0_76] : memref<1x1xf32, #tpu.memory_space<vmem>>, vector<1x1xf32>
      tpu.vector_store %arg10[%c0_75, %c0_76], %206 {strides = array<i32>} : memref<1x1xf32, #tpu.memory_space<vmem>>, vector<1x1xf32>,
    } else {
    }
    %c0 = arith.constant 0 : index
    %c0_3 = arith.constant 0 : index
    %6 = vector.load %arg1[%c0, %c0_3] : memref<8x1xi32, #tpu.memory_space<vmem>>, vector<8x1xi32>
    %7 = tpu.iota {dimensions = array<i32: 1>} : vector<8x8xi32>
    %8 = vector.broadcast %6 : vector<8x1xi32> to vector<8x8xi32>
    %9 = arith.cmpi eq, %7, %8 : vector<8x8xi32>
    %c0_4 = arith.constant 0 : index
    %c0_5 = arith.constant 0 : index
    %10 = vector.load %arg9[%c0_4, %c0_5] : memref<1x1xf32, #tpu.memory_space<vmem>>, vector<1x1xf32>
    %c0_6 = arith.constant 0 : index
    %c0_7 = arith.constant 0 : index
    %11 = vector.load %arg2[%c0_6, %c0_7] : memref<8x8xf32, #tpu.memory_space<vmem>>, vector<8x8xf32>
    %cst = arith.constant dense<0xFF800000> : vector<8xf32>
    %12 = vector.multi_reduction <maximumf>, %11, %cst [1] : vector<8x8xf32> to vector<8xf32>
    %13 = vector.shape_cast %12 : vector<8xf32> to vector<8x1xf32>
    %14 = vector.broadcast %13 : vector<8x1xf32> to vector<8x8xf32>
    %15 = arith.subf %11, %14 : vector<8x8xf32>
    %16 = math.exp %15 : vector<8x8xf32>
    %cst_8 = arith.constant dense<0.000000e+00> : vector<8xf32>
    %17 = vector.multi_reduction <add>, %16, %cst_8 [1] : vector<8x8xf32> to vector<8xf32>
    %18 = vector.shape_cast %17 : vector<8xf32> to vector<8x1xf32>
    %19 = math.log %18 : vector<8x1xf32>
    %20 = arith.addf %13, %19 : vector<8x1xf32>
    %cst_9 = arith.constant 0.000000e+00 : f32
    %21 = vector.broadcast %cst_9 : f32 to vector<8x8xf32>
    %22 = arith.select %9, %11, %21 : vector<8x8xi1>, vector<8x8xf32>
    %cst_10 = arith.constant dense<0.000000e+00> : vector<8xf32>
    %23 = vector.multi_reduction <add>, %22, %cst_10 [1] : vector<8x8xf32> to vector<8xf32>
    %24 = vector.shape_cast %23 : vector<8xf32> to vector<8x1xf32>
    %25 = arith.subf %20, %24 : vector<8x1xf32>
    %cst_11 = arith.constant dense<0.000000e+00> : vector<1xf32>
    %26 = vector.multi_reduction <add>, %25, %cst_11 [0] : vector<8x1xf32> to vector<1xf32>
    %27 = vector.shape_cast %26 : vector<1xf32> to vector<1x1xf32>
    %c0_12 = arith.constant 0 : index
    %c0_13 = arith.constant 0 : index
    %28 = vector.load %arg3[%c0_12, %c0_13] : memref<8x8xf32, #tpu.memory_space<vmem>>, vector<8x8xf32>
    %cst_14 = arith.constant dense<0xFF800000> : vector<8xf32>
    %29 = vector.multi_reduction <maximumf>, %28, %cst_14 [1] : vector<8x8xf32> to vector<8xf32>
    %30 = vector.shape_cast %29 : vector<8xf32> to vector<8x1xf32>
    %31 = vector.broadcast %30 : vector<8x1xf32> to vector<8x8xf32>
    %32 = arith.subf %28, %31 : vector<8x8xf32>
    %33 = math.exp %32 : vector<8x8xf32>
    %cst_15 = arith.constant dense<0.000000e+00> : vector<8xf32>
    %34 = vector.multi_reduction <add>, %33, %cst_15 [1] : vector<8x8xf32> to vector<8xf32>
    %35 = vector.shape_cast %34 : vector<8xf32> to vector<8x1xf32>
    %36 = math.log %35 : vector<8x1xf32>
    %37 = arith.addf %30, %36 : vector<8x1xf32>
    %cst_16 = arith.constant 0.000000e+00 : f32
    %38 = vector.broadcast %cst_16 : f32 to vector<8x8xf32>
    %39 = arith.select %9, %28, %38 : vector<8x8xi1>, vector<8x8xf32>
    %cst_17 = arith.constant dense<0.000000e+00> : vector<8xf32>
    %40 = vector.multi_reduction <add>, %39, %cst_17 [1] : vector<8x8xf32> to vector<8xf32>
    %41 = vector.shape_cast %40 : vector<8xf32> to vector<8x1xf32>
    %42 = arith.subf %37, %41 : vector<8x1xf32>
    %cst_18 = arith.constant dense<0.000000e+00> : vector<1xf32>
    %43 = vector.multi_reduction <add>, %42, %cst_18 [0] : vector<8x1xf32> to vector<1xf32>
    %44 = vector.shape_cast %43 : vector<1xf32> to vector<1x1xf32>
    %45 = arith.addf %27, %44 : vector<1x1xf32>
    %46 = arith.addf %10, %45 : vector<1x1xf32>
    %c0_19 = arith.constant 0 : index
    %c0_20 = arith.constant 0 : index
    %47 = vector.load %arg9[%c0_19, %c0_20] : memref<1x1xf32, #tpu.memory_space<vmem>>, vector<1x1xf32>
    tpu.vector_store %arg9[%c0_19, %c0_20], %46 {strides = array<i32>} : memref<1x1xf32, #tpu.memory_space<vmem>>, vector<1x1xf32>,
    %c0_i32_21 = arith.constant 0 : i32
    %48 = arith.cmpi eq, %arg0, %c0_i32_21 : i32
    %49 = arith.extui %48 : i1 to i32
    %c0_i32_22 = arith.constant 0 : i32
    %50 = arith.cmpi ne, %49, %c0_i32_22 : i32
    scf.if %50 {
      %c0_23 = arith.constant 0 : index
      %c0_24 = arith.constant 0 : index
      %51 = vector.load %arg9[%c0_23, %c0_24] : memref<1x1xf32, #tpu.memory_space<vmem>>, vector<1x1xf32>
      %cst_25 = arith.constant 6.250000e-02 : f32
      %52 = vector.broadcast %cst_25 : f32 to vector<1x1xf32>
      %53 = arith.mulf %51, %52 : vector<1x1xf32>
      %c0_26 = arith.constant 0 : index
      %c0_27 = arith.constant 0 : index
      %54 = vector.load %arg10[%c0_26, %c0_27] : memref<1x1xf32, #tpu.memory_space<vmem>>, vector<1x1xf32>
      %cst_28 = arith.constant 5.000000e-01 : f32
      %55 = vector.broadcast %cst_28 : f32 to vector<1x1xf32>
      %56 = arith.mulf %55, %54 : vector<1x1xf32>
      %57 = arith.addf %53, %56 : vector<1x1xf32>
      %58 = tpu.iota {dimensions = array<i32: 1>} : vector<1x128xi32>
      %c0_i32_29 = arith.constant 0 : i32
      %59 = vector.broadcast %c0_i32_29 : i32 to vector<1x128xi32>
      %60 = arith.cmpi eq, %58, %59 : vector<1x128xi32>
      %cst_30 = arith.constant 0.000000e+00 : f32
      %61 = vector.shape_cast %57 : vector<1x1xf32> to vector<1x1xf32>
      %62 = vector.broadcast %61 : vector<1x1xf32> to vector<1x128xf32>
      %63 = vector.broadcast %cst_30 : f32 to vector<1x128xf32>
      %64 = arith.select %60, %62, %63 : vector<1x128xi1>, vector<1x128xf32>
      %c1_i32 = arith.constant 1 : i32
      %65 = vector.broadcast %c1_i32 : i32 to vector<1x128xi32>
      %66 = arith.cmpi eq, %58, %65 : vector<1x128xi32>
      %cst_31 = arith.constant 0.000000e+00 : f32
      %67 = vector.shape_cast %53 : vector<1x1xf32> to vector<1x1xf32>
      %68 = vector.broadcast %67 : vector<1x1xf32> to vector<1x128xf32>
      %69 = vector.broadcast %cst_31 : f32 to vector<1x128xf32>
      %70 = arith.select %66, %68, %69 : vector<1x128xi1>, vector<1x128xf32>
      %71 = arith.addf %64, %70 : vector<1x128xf32>
      %c2_i32 = arith.constant 2 : i32
      %72 = vector.broadcast %c2_i32 : i32 to vector<1x128xi32>
      %73 = arith.cmpi eq, %58, %72 : vector<1x128xi32>
      %cst_32 = arith.constant 0.000000e+00 : f32
      %74 = vector.shape_cast %54 : vector<1x1xf32> to vector<1x1xf32>
      %75 = vector.broadcast %74 : vector<1x1xf32> to vector<1x128xf32>
      %76 = vector.broadcast %cst_32 : f32 to vector<1x128xf32>
      %77 = arith.select %73, %75, %76 : vector<1x128xi1>, vector<1x128xf32>
      %78 = arith.addf %71, %77 : vector<1x128xf32>
      %c0_33 = arith.constant 0 : index
      %c0_34 = arith.constant 0 : index
      %79 = vector.load %arg8[%c0_33, %c0_34] : memref<1x128xf32, #tpu.memory_space<vmem>>, vector<1x128xf32>
      tpu.vector_store %arg8[%c0_33, %c0_34], %78 {strides = array<i32>} : memref<1x128xf32, #tpu.memory_space<vmem>>, vector<1x128xf32>,
    } else {
    }
    return
  }
  func.func @transform_0(%arg0: i32) -> (i32, i32) {
    %c0_i32 = arith.constant 0 : i32
    %c0_i32_0 = arith.constant 0 : i32
    return %arg0, %c0_i32 : i32, i32
  }
  func.func @transform_1(%arg0: i32) -> (i32, i32) {
    %c0_i32 = arith.constant 0 : i32
    %c0_i32_0 = arith.constant 0 : i32
    return %arg0, %c0_i32 : i32, i32
  }
  func.func @transform_2(%arg0: i32) -> (i32, i32) {
    %c0_i32 = arith.constant 0 : i32
    %c0_i32_0 = arith.constant 0 : i32
    return %arg0, %c0_i32 : i32, i32
  }
  func.func @transform_3(%arg0: i32) -> (i32, i32) {
    %c0_i32 = arith.constant 0 : i32
    %c0_i32_0 = arith.constant 0 : i32
    %c0_i32_1 = arith.constant 0 : i32
    return %c0_i32, %c0_i32_0 : i32, i32
  }
  func.func @transform_4(%arg0: i32) -> (i32, i32) {
    %c0_i32 = arith.constant 0 : i32
    %c0_i32_0 = arith.constant 0 : i32
    %c0_i32_1 = arith.constant 0 : i32
    return %c0_i32, %c0_i32_0 : i32, i32
  }
  func.func @transform_5(%arg0: i32) -> (i32, i32) {
    %c0_i32 = arith.constant 0 : i32
    %c0_i32_0 = arith.constant 0 : i32
    %c0_i32_1 = arith.constant 0 : i32
    return %c0_i32, %c0_i32_0 : i32, i32
  }
  func.func @transform_6(%arg0: i32) -> (i32, i32) {
    %c0_i32 = arith.constant 0 : i32
    %c0_i32_0 = arith.constant 0 : i32
    %c0_i32_1 = arith.constant 0 : i32
    return %c0_i32, %c0_i32_0 : i32, i32
  }
  func.func @transform_7(%arg0: i32) -> (i32, i32) {
    %c0_i32 = arith.constant 0 : i32
    %c0_i32_0 = arith.constant 0 : i32
    %c0_i32_1 = arith.constant 0 : i32
    return %c0_i32, %c0_i32_0 : i32, i32
  }
}

</mosaic_0001>

<llo_original>
// kernel: tpu_custom_call.1
$region0: #{tpu_custom_call.1}
  #allocation0 [shape = 'u32[]', space=smem, size = 0x4, offset = 0x4, fixed_abs, tag = 'smem constant byte address 0x4 - core index']
  #allocation1 [shape = 'u32[72,128]{1,0:T(1,128)}', space=vmem, size = 0x9000, scoped, tag = 'internal scratch']
  #allocation2 [shape = 'f32[1,1]{1,0:T(1,128)}', space=vmem, size = 0x200, scoped, tag = 'scratch operand']
  #allocation3 [shape = 'f32[1,1]{1,0:T(1,128)}', space=vmem, size = 0x200, scoped, tag = 'scratch operand']
  %s0 = inlined_call_operand.vmem [shape: s32[8,1], index: 0, kind: input, shape index: {}]
  %s1 = inlined_call_operand.vmem [shape: f32[8,8], index: 1, kind: input, shape index: {}]
  %s2 = inlined_call_operand.vmem [shape: f32[8,8], index: 2, kind: input, shape index: {}]
  %s3 = inlined_call_operand.vmem [shape: f32[8,1], index: 3, kind: input, shape index: {}]
  %s4 = inlined_call_operand.vmem [shape: f32[1,8], index: 4, kind: input, shape index: {}]
  %s5 = inlined_call_operand.hbm [shape: f32[5,8], index: 5, kind: input, shape index: {}]
  %s6 = inlined_call_operand.hbm [shape: f32[8,5], index: 6, kind: input, shape index: {}]
  %s7 = inlined_call_operand.hbm [shape: f32[1,128], index: 7, kind: output, shape index: {}]
  %s8 = sld [smem:[#allocation0]]
  $region54: #{tpu_custom_call.1} parent=0
    _
  %s10 = ssub.s32 1, %s8
  %s11 = scalar_select 0, %s10, %s8
  $region1: #{tpu_custom_call.1} parent=0
    #allocation4 [shape = 'u8[4096]{0}', space=vmem, size = 0x1000, scoped, tag = 'input window, operand 5, single buffered']
    #allocation5 [shape = 's32[1]{0}', space=sflag, size = 0x4, scoped, tag = 'scoped memory for tpu_custom_call.1']
    #allocation6 [shape = 's32[1]{0}', space=sflag, size = 0x4, scoped, tag = 'scoped memory for tpu_custom_call.1']
    #allocation7 [shape = 'u8[4096]{0}', space=vmem, size = 0x1000, scoped, tag = 'input window, operand 6, single buffered']
    #allocation8 [shape = 's32[1]{0}', space=sflag, size = 0x4, scoped, tag = 'scoped memory for tpu_custom_call.1']
    #allocation9 [shape = 'u8[512]{0}', space=vmem, size = 0x400, scoped, tag = 'output window, operand 0, single buffered']
    %12 = vsyncpa [#allocation5], 0
    %13 = vsyncpa [#allocation8], 0
    %14 = vsyncpa [#allocation6], 0
    // Predicated region
    $region2: #{tpu_custom_call.1} parent=1 // pred_check
      _
    $region3: #{tpu_custom_call.1} parent=1 // pred_check_branch
      %16 = sbr.rel (0) target = $region5
    $region4: #{tpu_custom_call.1} parent=1 // pred_region
      _
    $region5: #{tpu_custom_call.1} parent=1 // pred_fallthru
      _
    // Predicated region
    $region6: #{tpu_custom_call.1} parent=1 // pred_check
      _
    $region7: #{tpu_custom_call.1} parent=1 // pred_check_branch
      %18 = sbr.rel (0) target = $region9
    $region8: #{tpu_custom_call.1} parent=1 // pred_region
      _
    $region9: #{tpu_custom_call.1} parent=1 // pred_fallthru
      _
    // Predicated region
    $region10: #{tpu_custom_call.1} parent=1 // pred_check
      _
    $region11: #{tpu_custom_call.1} parent=1 // pred_check_branch
      %20 = sbr.rel (0) target = $region13
    $region12: #{tpu_custom_call.1} parent=1 // pred_region
      _
    $region13: #{tpu_custom_call.1} parent=1 // pred_fallthru
      _
    // Predicated region
    $region14: #{tpu_custom_call.1} parent=1 // pred_check
      _
    $region15: #{tpu_custom_call.1} parent=1 // pred_check_branch
      %22 = sbr.rel (0) target = $region17
    $region16: #{tpu_custom_call.1} parent=1 // pred_region
      _
    $region17: #{tpu_custom_call.1} parent=1 // pred_fallthru
      _
    // Predicated region
    $region18: #{tpu_custom_call.1} parent=1 // pred_check
      _
    $region19: #{tpu_custom_call.1} parent=1 // pred_check_branch
      %24 = sbr.rel (0) target = $region21
    $region20: #{tpu_custom_call.1} parent=1 // pred_region
      _
    $region21: #{tpu_custom_call.1} parent=1 // pred_fallthru
      _
    // Predicated region
    $region22: #{tpu_custom_call.1} parent=1 // pred_check
      _
    $region23: #{tpu_custom_call.1} parent=1 // pred_check_branch
      %26 = sbr.rel (0) target = $region25
    $region24: #{tpu_custom_call.1} parent=1 // pred_region
      %28 = vsyncadd [#allocation5], 0
      %s30 = sshll.u32 %s5, 4
      %s31 = int_to_ptr.hbm [resolvable:$true] %s30
      %s32 = sshll.u32 [#allocation4], 4
      %s33 = int_to_ptr.vmem [resolvable:$true] %s32
      %35 = dma.hbm_to_vmem [thread:$0]  %s31, 128, %s33, [#allocation5]
    $region25: #{tpu_custom_call.1} parent=1 // pred_fallthru
      _
    // Predicated region
    $region26: #{tpu_custom_call.1} parent=1 // pred_check
      _
    $region27: #{tpu_custom_call.1} parent=1 // pred_check_branch
      %37 = sbr.rel (0) target = $region29
    $region28: #{tpu_custom_call.1} parent=1 // pred_region
      %39 = vsyncadd [#allocation8], 0
      %s41 = sshll.u32 %s6, 4
      %s42 = int_to_ptr.hbm [resolvable:$true] %s41
      %s43 = sshll.u32 [#allocation7], 4
      %s44 = int_to_ptr.vmem [resolvable:$true] %s43
      %46 = dma.hbm_to_vmem [thread:$0]  %s42, 128, %s44, [#allocation8]
    $region29: #{tpu_custom_call.1} parent=1 // pred_fallthru
      _
    // Predicated region
    $region30: #{tpu_custom_call.1} parent=1 // pred_check
      _
    $region31: #{tpu_custom_call.1} parent=1 // pred_check_branch
      %48 = sbr.rel (0) target = $region33
    $region32: #{tpu_custom_call.1} parent=1 // pred_region
      %50 = dma.done [#allocation5], 128
    $region33: #{tpu_custom_call.1} parent=1 // pred_fallthru
      _
    // Predicated region
    $region34: #{tpu_custom_call.1} parent=1 // pred_check
      _
    $region35: #{tpu_custom_call.1} parent=1 // pred_check_branch
      %52 = sbr.rel (0) target = $region37
    $region36: #{tpu_custom_call.1} parent=1 // pred_region
      %54 = dma.done [#allocation8], 128
    $region37: #{tpu_custom_call.1} parent=1 // pred_fallthru
      _
    %p55 = scmp.eq.s32.totalorder 0, 0
    // Predicated region
    $region38: #{tpu_custom_call.1} parent=1 // pred_check
      %p56 = pneg %p55
    $region39: #{tpu_custom_call.1} parent=1 // pred_check_branch
      %58 = sbr.rel (%p56) target = $region41
    $region40: #{tpu_custom_call.1} parent=1 // pred_region
      %vm59 = vcmask 0
      %60 = vst.msk [vmem:[#allocation2] sm:$0x1] %vm59, 0.0
      %v61 = vld [vmem:[%s3] sm:$0xff]
      %v62 = vld [vmem:[%s4] sm:$0x1]
      %v63 = vld [vmem:[#allocation4] sm:$0x1f]
      %v64 = vld [vmem:[#allocation7] sm:$0xff]
      %66 = vset.pattern.permute.xlu0 0
      %67 = vperm.xlu0 %66, %v61
      %v68 = vpop.permute.xlu0 %67
      %v71 = vperm.slane %v62, 0
      %v73 = vsub.f32 %v68, %v71
      %v74 = vand.u32 2147483647, %v73
      %vm75 = vcmask 64512
      %v76 = vsel %vm75, %v74, 0.0
      %77 = vadd.xlane.f32.xlu0 %v76
      %v78 = vpop.xlane.xlu0 %77
      %v79 = vrot.slane %v78, 4
      %v80 = vadd.f32 %v78, %v79
      %v81 = vrot.slane %v80, 2
      %v82 = vadd.f32 %v80, %v81
      %v83 = vrot.slane %v82, 1
      %v84 = vadd.f32 %v82, %v83
      %v85 = vmul.f32 %v84, 0.015625
      %v86 = vmul.f32 %v85, -2.0
      %v87 = vperm.slane %v63, 0
      %v88 = vsub.f32 %v68, %v87
      %v89 = vand.u32 2147483647, %v88
      %91 = vset.pattern.permute.xlu0 0
      %92 = vperm.xlu0 %91, %v64
      %v93 = vpop.permute.xlu0 %92
      %v95 = vsub.f32 %v93, %v87
      %v96 = vand.u32 2147483647, %v95
      %v97 = vsel %vm75, %v89, 0.0
      %98 = vadd.xlane.f32.xlu0 %v97
      %v99 = vpop.xlane.xlu0 %98
      %v100 = vrot.slane %v99, 4
      %v101 = vadd.f32 %v99, %v100
      %v102 = vrot.slane %v101, 2
      %v103 = vadd.f32 %v101, %v102
      %v104 = vrot.slane %v103, 1
      %v105 = vadd.f32 %v103, %v104
      %v106 = vmul.f32 %v105, 0.015625
      %v107 = vsel %vm75, %v96, 0.0
      %108 = vadd.xlane.f32.xlu0 %v107
      %v109 = vpop.xlane.xlu0 %108
      %v110 = vrot.slane %v109, 4
      %v111 = vadd.f32 %v109, %v110
      %v112 = vrot.slane %v111, 2
      %v113 = vadd.f32 %v111, %v112
      %v114 = vrot.slane %v113, 1
      %v115 = vadd.f32 %v113, %v114
      %v116 = vmul.f32 %v115, 0.015625
      %v117 = vmul.f32 %v116, 0.5
      %v118 = vsub.f32 %v106, %v117
      %v119 = vadd.f32 %v86, %v118
      %v120 = vperm.slane %v63, 1
      %v121 = vsub.f32 %v68, %v120
      %v122 = vand.u32 2147483647, %v121
      %123 = vset.pattern.permute.xlu0 1
      %124 = vperm.xlu0 %123, %v64
      %v125 = vpop.permute.xlu0 %124
      %v127 = vsub.f32 %v125, %v120
      %v128 = vand.u32 2147483647, %v127
      %v129 = vsel %vm75, %v122, 0.0
      %130 = vadd.xlane.f32.xlu0 %v129
      %v131 = vpop.xlane.xlu0 %130
      %v132 = vrot.slane %v131, 4
      %v133 = vadd.f32 %v131, %v132
      %v134 = vrot.slane %v133, 2
      %v135 = vadd.f32 %v133, %v134
      %v136 = vrot.slane %v135, 1
      %v137 = vadd.f32 %v135, %v136
      %v138 = vmul.f32 %v137, 0.015625
      %v139 = vsel %vm75, %v128, 0.0
      %140 = vadd.xlane.f32.xlu0 %v139
      %v141 = vpop.xlane.xlu0 %140
      %v142 = vrot.slane %v141, 4
      %v143 = vadd.f32 %v141, %v142
      %v144 = vrot.slane %v143, 2
      %v145 = vadd.f32 %v143, %v144
      %v146 = vrot.slane %v145, 1
      %v147 = vadd.f32 %v145, %v146
      %v148 = vmul.f32 %v147, 0.015625
      %v149 = vmul.f32 %v148, 0.5
      %v150 = vsub.f32 %v138, %v149
      %v151 = vadd.f32 %v119, %v150
      %v152 = vperm.slane %v63, 2
      %v153 = vsub.f32 %v68, %v152
      %v154 = vand.u32 2147483647, %v153
      %155 = vset.pattern.permute.xlu0 2
      %156 = vperm.xlu0 %155, %v64
      %v157 = vpop.permute.xlu0 %156
      %v159 = vsub.f32 %v157, %v152
      %v160 = vand.u32 2147483647, %v159
      %v161 = vsel %vm75, %v154, 0.0
      %162 = vadd.xlane.f32.xlu0 %v161
      %v163 = vpop.xlane.xlu0 %162
      %v164 = vrot.slane %v163, 4
      %v165 = vadd.f32 %v163, %v164
      %v166 = vrot.slane %v165, 2
      %v167 = vadd.f32 %v165, %v166
      %v168 = vrot.slane %v167, 1
      %v169 = vadd.f32 %v167, %v168
      %v170 = vmul.f32 %v169, 0.015625
      %v171 = vsel %vm75, %v160, 0.0
      %172 = vadd.xlane.f32.xlu0 %v171
      %v173 = vpop.xlane.xlu0 %172
      %v174 = vrot.slane %v173, 4
      %v175 = vadd.f32 %v173, %v174
      %v176 = vrot.slane %v175, 2
      %v177 = vadd.f32 %v175, %v176
      %v178 = vrot.slane %v177, 1
      %v179 = vadd.f32 %v177, %v178
      %v180 = vmul.f32 %v179, 0.015625
      %v181 = vmul.f32 %v180, 0.5
      %v182 = vsub.f32 %v170, %v181
      %v183 = vadd.f32 %v151, %v182
      %v184 = vperm.slane %v63, 3
      %v185 = vsub.f32 %v68, %v184
      %v186 = vand.u32 2147483647, %v185
      %187 = vset.pattern.permute.xlu0 3
      %188 = vperm.xlu0 %187, %v64
      %v189 = vpop.permute.xlu0 %188
      %v191 = vsub.f32 %v189, %v184
      %v192 = vand.u32 2147483647, %v191
      %v193 = vsel %vm75, %v186, 0.0
      %194 = vadd.xlane.f32.xlu0 %v193
      %v195 = vpop.xlane.xlu0 %194
      %v196 = vrot.slane %v195, 4
      %v197 = vadd.f32 %v195, %v196
      %v198 = vrot.slane %v197, 2
      %v199 = vadd.f32 %v197, %v198
      %v200 = vrot.slane %v199, 1
      %v201 = vadd.f32 %v199, %v200
      %v202 = vmul.f32 %v201, 0.015625
      %v203 = vsel %vm75, %v192, 0.0
      %204 = vadd.xlane.f32.xlu0 %v203
      %v205 = vpop.xlane.xlu0 %204
      %v206 = vrot.slane %v205, 4
      %v207 = vadd.f32 %v205, %v206
      %v208 = vrot.slane %v207, 2
      %v209 = vadd.f32 %v207, %v208
      %v210 = vrot.slane %v209, 1
      %v211 = vadd.f32 %v209, %v210
      %v212 = vmul.f32 %v211, 0.015625
      %v213 = vmul.f32 %v212, 0.5
      %v214 = vsub.f32 %v202, %v213
      %v215 = vmul.f32 %v214, 0.5
      %v216 = vadd.f32 %v183, %v215
      %v217 = vperm.slane %v63, 4
      %v218 = vsub.f32 %v68, %v217
      %v219 = vand.u32 2147483647, %v218
      %220 = vset.pattern.permute.xlu0 4
      %221 = vperm.xlu0 %220, %v64
      %v222 = vpop.permute.xlu0 %221
      %v224 = vsub.f32 %v222, %v217
      %v225 = vand.u32 2147483647, %v224
      %v226 = vsel %vm75, %v219, 0.0
      %227 = vadd.xlane.f32.xlu0 %v226
      %v228 = vpop.xlane.xlu0 %227
      %v229 = vrot.slane %v228, 4
      %v230 = vadd.f32 %v228, %v229
      %v231 = vrot.slane %v230, 2
      %v232 = vadd.f32 %v230, %v231
      %v233 = vrot.slane %v232, 1
      %v234 = vadd.f32 %v232, %v233
      %v235 = vmul.f32 %v234, 0.015625
      %v236 = vsel %vm75, %v225, 0.0
      %237 = vadd.xlane.f32.xlu0 %v236
      %v238 = vpop.xlane.xlu0 %237
      %v239 = vrot.slane %v238, 4
      %v240 = vadd.f32 %v238, %v239
      %v241 = vrot.slane %v240, 2
      %v242 = vadd.f32 %v240, %v241
      %v243 = vrot.slane %v242, 1
      %v244 = vadd.f32 %v242, %v243
      %v245 = vmul.f32 %v244, 0.015625
      %v246 = vmul.f32 %v245, 0.5
      %v247 = vsub.f32 %v235, %v246
      %v248 = vmul.f32 %v247, 0.5
      %v249 = vadd.f32 %v216, %v248
      %250 = vst.msk [vmem:[#allocation3] sm:$0x1] %vm59, %v249
    $region41: #{tpu_custom_call.1} parent=1 // pred_fallthru
      _
    %v251 = vld [vmem:[%s0] sm:$0xff]
    %v252 = vlaneseq
    %v253 = vand.u32 %v252, 127
    %254 = vset.pattern.permute.xlu0 0
    %255 = vperm.xlu0 %254, %v251
    %v256 = vpop.permute.xlu0 %255
    %vm257 = vcmp.eq.s32.totalorder %v253, %v256
    %v258 = vld [vmem:[#allocation2] sm:$0x1]
    %v259 = vld [vmem:[%s1] sm:$0xff]
    %vm260 = vcmask 64512
    %v261 = vsel %vm260, %v259, -inf
    %262 = vmax.xlane.f32.xlu0 %v261
    %v263 = vpop.xlane.xlu0 %262
    %v264 = vsub.f32 %v259, %v263
    %v265 = vmul.f32 %v264, 1.442695
    %v266 = vpow.pop %v265
    %v267 = vsel %vm260, %v266, 0.0
    %268 = vadd.xlane.f32.xlu0 %v267
    %v269 = vpop.xlane.xlu0 %268
    %v270 = vlog2.pop %v269
    %v271 = vmul.f32 %v270, 0.6931472
    %v272 = vadd.f32 %v263, %v271
    %v273 = vsel %vm257, %v259, 0.0
    %v274 = vsel %vm260, %v273, 0.0
    %275 = vadd.xlane.f32.xlu0 %v274
    %v276 = vpop.xlane.xlu0 %275
    %v277 = vsub.f32 %v272, %v276
    %v278 = vrot.slane %v277, 4
    %v279 = vadd.f32 %v277, %v278
    %v280 = vrot.slane %v279, 2
    %v281 = vadd.f32 %v279, %v280
    %v282 = vrot.slane %v281, 1
    %v283 = vadd.f32 %v281, %v282
    %v284 = vld [vmem:[%s2] sm:$0xff]
    %v285 = vsel %vm260, %v284, -inf
    %286 = vmax.xlane.f32.xlu0 %v285
    %v287 = vpop.xlane.xlu0 %286
    %v288 = vsub.f32 %v284, %v287
    %v289 = vmul.f32 %v288, 1.442695
    %v290 = vpow.pop %v289
    %v291 = vsel %vm260, %v290, 0.0
    %292 = vadd.xlane.f32.xlu0 %v291
    %v293 = vpop.xlane.xlu0 %292
    %v294 = vlog2.pop %v293
    %v295 = vmul.f32 %v294, 0.6931472
    %v296 = vadd.f32 %v287, %v295
    %v297 = vsel %vm257, %v284, 0.0
    %v298 = vsel %vm260, %v297, 0.0
    %299 = vadd.xlane.f32.xlu0 %v298
    %v300 = vpop.xlane.xlu0 %299
    %v301 = vsub.f32 %v296, %v300
    %v302 = vrot.slane %v301, 4
    %v303 = vadd.f32 %v301, %v302
    %v304 = vrot.slane %v303, 2
    %v305 = vadd.f32 %v303, %v304
    %v306 = vrot.slane %v305, 1
    %v307 = vadd.f32 %v305, %v306
    %v308 = vadd.f32 %v283, %v307
    %v309 = vadd.f32 %v258, %v308
    %vm310 = vcmask 0
    %311 = vst.msk [vmem:[#allocation2] sm:$0x1] %vm310, %v309
    // Predicated region
    $region42: #{tpu_custom_call.1} parent=1 // pred_check
      %p312 = pneg %p55
    $region43: #{tpu_custom_call.1} parent=1 // pred_check_branch
      %314 = sbr.rel (%p312) target = $region45
    $region44: #{tpu_custom_call.1} parent=1 // pred_region
      %v315 = vld [vmem:[#allocation2] sm:$0x1]
      %v316 = vmul.f32 %v315, 0.0625
      %v317 = vld [vmem:[#allocation3] sm:$0x1]
      %v318 = vmul.f32 %v317, 0.5
      %v319 = vadd.f32 %v316, %v318
      %vm320 = vcmp.eq.s32.totalorder %v253, 0
      %322 = vset.pattern.permute.xlu0 0
      %323 = vperm.xlu0 %322, %v319
      %v324 = vpop.permute.xlu0 %323
      %v326 = vperm.slane %v324, 0
      %v327 = vsel %vm320, %v326, 0.0
      %vm328 = vcmp.eq.s32.totalorder %v253, 1
      %330 = vset.pattern.permute.xlu0 0
      %331 = vperm.xlu0 %330, %v316
      %v332 = vpop.permute.xlu0 %331
      %v334 = vperm.slane %v332, 0
      %v335 = vsel %vm328, %v334, 0.0
      %v336 = vadd.f32 %v327, %v335
      %vm337 = vcmp.eq.s32.totalorder %v253, 2
      %339 = vset.pattern.permute.xlu0 0
      %340 = vperm.xlu0 %339, %v317
      %v341 = vpop.permute.xlu0 %340
      %v343 = vperm.slane %v341, 0
      %v344 = vsel %vm337, %v343, 0.0
      %v345 = vadd.f32 %v336, %v344
      %346 = vst [vmem:[#allocation9] sm:$0x1] %v345
    $region45: #{tpu_custom_call.1} parent=1 // pred_fallthru
      _
    // Predicated region
    $region46: #{tpu_custom_call.1} parent=1 // pred_check
      _
    $region47: #{tpu_custom_call.1} parent=1 // pred_check_branch
      %348 = sbr.rel (0) target = $region49
    $region48: #{tpu_custom_call.1} parent=1 // pred_region
      %350 = vsyncadd [#allocation6], 0
      %s352 = sshll.u32 [#allocation9], 4
      %s353 = int_to_ptr.vmem [resolvable:$true] %s352
      %s354 = sshll.u32 %s7, 4
      %s355 = int_to_ptr.hbm [resolvable:$true] %s354
      %357 = dma.vmem_to_hbm [thread:$0]  %s353, 16, %s355, [#allocation6]
    $region49: #{tpu_custom_call.1} parent=1 // pred_fallthru
      _
    // Predicated region
    $region50: #{tpu_custom_call.1} parent=1 // pred_check
      _
    $region51: #{tpu_custom_call.1} parent=1 // pred_check_branch
      %359 = sbr.rel (0) target = $region53
    $region52: #{tpu_custom_call.1} parent=1 // pred_region
      %361 = dma.done [#allocation6], 16
    $region53: #{tpu_custom_call.1} parent=1 // pred_fallthru
      _
    %362 = vsyncpa [#allocation5], 1
    %363 = vsyncpa [#allocation8], 1
    %364 = vsyncpa [#allocation6], 1

</llo_original>
